<compile_context>
chip_gen: v7x
topology: tpu7x:2x2x1
jax: 0.10.0
libtpu: 0.0.40
codegen_flags: <defaults>
</compile_context>

<pallas_src>
import jax
import jax.numpy as jnp
from jax.experimental import pallas as pl
from jax.experimental.pallas import tpu as pltpu

# Total VMEM budget for pipeline buffers: streams x 2 buffers x tile bytes.
_PIPELINE_BYTES = 12 << 20


# ---------------------------------------------------------------------------
# Pallas kernels
# ---------------------------------------------------------------------------
def _lower_bound_fwd_kernel(bound_ref, x_ref, o_ref):
    # bound_ref: SMEM (1,) f32 buffer; x_ref/o_ref: VMEM tiles.
    b = bound_ref[0].astype(x_ref.dtype)
    o_ref[...] = jnp.maximum(x_ref[...], b).astype(o_ref.dtype)


def _lower_bound_bwd_kernel(bound_ref, x_ref, g_ref, gx_ref):
    b = bound_ref[0].astype(x_ref.dtype)
    x = x_ref[...]
    g = g_ref[...]
    pass_through = jnp.logical_or(x >= b, g < 0)
    gx_ref[...] = (g * pass_through.astype(g.dtype)).astype(gx_ref.dtype)


# ---------------------------------------------------------------------------
# Layout helpers: present x as a lane-dense 2-D slab (rows, lanes)
# ---------------------------------------------------------------------------
def _sublane_pack(dtype) -> int:
    # native sublane packing: 8 rows (f32), 16 (bf16/fp16), 32 (int8/fp8)
    return max(8, 32 // jnp.dtype(dtype).itemsize)


def _to_slab(x):
    orig_shape = x.shape
    n = x.size
    sub = _sublane_pack(x.dtype)
    # Fast path: widest lane dim (multiple of 128) such that the slab keeps the
    # native (sublane, 128) tiling with NO padding -> pure reshape, no HBM copies.
    if n > 0:
        for lanes in (1024, 512, 256, 128):
            if n % (lanes * sub) == 0:
                return x.reshape(n // lanes, lanes), orig_shape, n, True
    # Slow path: flatten, pad to (rows, 128) with rows aligned to the packing.
    lanes = 128
    rows = pl.cdiv(max(n, 1), lanes)
    rows = pl.cdiv(rows, sub) * sub
    flat = jnp.pad(jnp.ravel(x), (0, rows * lanes - n))
    return flat.reshape(rows, lanes), orig_shape, n, False


def _from_slab(slab, orig_shape, n, aligned):
    if aligned:
        return slab.reshape(orig_shape)
    return slab.reshape(-1)[:n].reshape(orig_shape)


def _pick_block_rows(rows, lanes, dtype, n_streams):
    itemsize = jnp.dtype(dtype).itemsize
    sub = _sublane_pack(dtype)
    tile_bytes = _PIPELINE_BYTES // (2 * n_streams)  # double-buffered per stream
    target = tile_bytes // (lanes * itemsize)
    target = max(sub, (target // sub) * sub)          # sublane-aligned block
    return rows if rows <= target else target


# ---------------------------------------------------------------------------
# pallas_call driver shared by the forward / backward elementwise kernels
# ---------------------------------------------------------------------------
def _run_elementwise(kernel, bound, slabs, out_dtype, flops_per_elem):
    rows, lanes = slabs[0].shape
    n_streams = len(slabs) + 1                        # inputs + one output
    block_rows = _pick_block_rows(rows, lanes, out_dtype, n_streams)
    grid = (pl.cdiv(rows, block_rows),)

    data_spec = pl.BlockSpec((block_rows, lanes), lambda i: (i, 0))
    in_specs = [pl.BlockSpec(memory_space=pltpu.MemorySpace.SMEM)] + [
        data_spec for _ in slabs
    ]
    n_elems = rows * lanes
    bytes_accessed = n_streams * n_elems * jnp.dtype(out_dtype).itemsize

    return pl.pallas_call(
        kernel,
        out_shape=jax.ShapeDtypeStruct((rows, lanes), out_dtype),
        grid=grid,
        in_specs=in_specs,
        out_specs=data_spec,
        compiler_params=pltpu.CompilerParams(
            dimension_semantics=("parallel",)
        ),
        cost_estimate=pl.CostEstimate(
            flops=flops_per_elem * n_elems,
            transcendentals=0,
            bytes_accessed=bytes_accessed,
        ),
    )(bound, *slabs)


# ---------------------------------------------------------------------------
# LowerBound op with custom gradient (mirrors LowerBoundFunction)
# ---------------------------------------------------------------------------
@jax.custom_vjp
def lower_bound(x, bound):
    slab, orig_shape, n, aligned = _to_slab(x)
    out = _run_elementwise(_lower_bound_fwd_kernel, bound, [slab], x.dtype, 1)
    return _from_slab(out, orig_shape, n, aligned)


def _lower_bound_fwd_rule(x, bound):
    return lower_bound(x, bound), (x, bound)


def _lower_bound_bwd_rule(res, g):
    x, bound = res
    x_slab, orig_shape, n, aligned = _to_slab(x)
    g_slab, _, _, _ = _to_slab(g.astype(x.dtype))
    gx = _run_elementwise(
        _lower_bound_bwd_kernel, bound, [x_slab, g_slab], x.dtype, 3
    )
    # bound is a non-trainable buffer; its cotangent is zero (PyTorch returns None).
    return _from_slab(gx, orig_shape, n, aligned), jnp.zeros_like(bound)


lower_bound.defvjp(_lower_bound_fwd_rule, _lower_bound_bwd_rule)


class LowerBound:
    """JAX/Pallas equivalent of compressai's LowerBound module."""

    def __init__(self, bound: float):
        # registered buffer `bound` of shape [1], like the PyTorch module
        self.bound = jnp.array([float(bound)], dtype=jnp.float32)

    def __call__(self, x):
        return lower_bound(x, self.bound)


# ---------------------------------------------------------------------------
if __name__ == "__main__":
    key = jax.random.PRNGKey(0)
    # NCHW input, small shape (aligned fast path)
    x = jax.random.normal(key, (2, 4, 16, 16), dtype=jnp.float32)

    module = LowerBound(0.1)  # deterministic "parameter" (buffer) init

    y = module(x)
    y = jax.block_until_ready(y)

    # forward correctness vs plain JAX reference
    ref = jnp.maximum(x, module.bound[0])
    assert y.shape == x.shape and y.dtype == x.dtype
    assert bool(jnp.allclose(y, ref)), "forward mismatch"

    # exercise the custom backward (Pallas kernel) and check against reference
    gx = jax.grad(lambda a: jnp.sum(module(a) * jnp.sign(a)))(x)
    gx = jax.block_until_ready(gx)
    g_up = jnp.sign(x)
    gx_ref = jnp.where((x >= module.bound[0]) | (g_up < 0), g_up, 0.0)
    assert bool(jnp.allclose(gx, gx_ref)), "backward mismatch"

    # non-aligned (padded) slow path with a tiny odd shape
    x2 = jax.random.normal(jax.random.PRNGKey(1), (3, 5, 7), dtype=jnp.float32)
    y2 = jax.block_until_ready(module(x2))
    assert bool(jnp.allclose(y2, jnp.maximum(x2, module.bound[0]))), "padded-path mismatch"

    # bf16 fast path (bound cast happens inside the kernel; max is exact)
    x3 = jax.random.normal(jax.random.PRNGKey(2), (2, 4, 16, 16), dtype=jnp.bfloat16)
    y3 = jax.block_until_ready(module(x3))
    ref3 = jnp.maximum(x3, module.bound[0].astype(jnp.bfloat16))
    assert y3.dtype == jnp.bfloat16
    assert bool(jnp.all(y3 == ref3)), "bf16 mismatch"

    print("KERNEL_OK")
</pallas_src>

<mosaic_0001>
module attributes {stable_mosaic.version = 11 : i64} {
  func.func @_lower_bound_fwd_kernel(%arg0: i32, %arg1: memref<1xf32, #tpu.memory_space<smem>>, %arg2: memref<8x256xf32, #tpu.memory_space<vmem>>, %arg3: memref<8x256xf32, #tpu.memory_space<vmem>>) attributes {dimension_semantics = [#tpu.dimension_semantics<parallel>], iteration_bounds = array<i64: 1>, scalar_prefetch = 0 : i64, scratch_operands = 0 : i64, tpu.core_type = #tpu.core_type<tc>, window_params = [{transform_indices = @transform_0, window_bounds = array<i64: 1>}, {transform_indices = @transform_1, window_bounds = array<i64: 8, 256>}, {transform_indices = @transform_2, window_bounds = array<i64: 8, 256>}]} {
    %c0 = arith.constant 0 : index
    %0 = memref.load %arg1[%c0] : memref<1xf32, #tpu.memory_space<smem>>
    %c0_0 = arith.constant 0 : index
    %c0_1 = arith.constant 0 : index
    %1 = vector.load %arg2[%c0_0, %c0_1] : memref<8x256xf32, #tpu.memory_space<vmem>>, vector<8x256xf32>
    %2 = vector.broadcast %0 : f32 to vector<8x256xf32>
    %3 = arith.maximumf %1, %2 : vector<8x256xf32>
    %c0_2 = arith.constant 0 : index
    %c0_3 = arith.constant 0 : index
    %4 = vector.load %arg3[%c0_2, %c0_3] : memref<8x256xf32, #tpu.memory_space<vmem>>, vector<8x256xf32>
    tpu.vector_store %arg3[%c0_2, %c0_3], %3 {strides = array<i32>} : memref<8x256xf32, #tpu.memory_space<vmem>>, vector<8x256xf32>,
    return
  }
  func.func @transform_0(%arg0: i32) -> i32 {
    %c0_i32 = arith.constant 0 : i32
    %c0_i32_0 = arith.constant 0 : i32
    return %c0_i32 : i32
  }
  func.func @transform_1(%arg0: i32) -> (i32, i32) {
    %c0_i32 = arith.constant 0 : i32
    %c0_i32_0 = arith.constant 0 : i32
    return %arg0, %c0_i32 : i32, i32
  }
  func.func @transform_2(%arg0: i32) -> (i32, i32) {
    %c0_i32 = arith.constant 0 : i32
    %c0_i32_0 = arith.constant 0 : i32
    return %arg0, %c0_i32 : i32, i32
  }
}

</mosaic_0001>

<llo_original>
// kernel: tpu_custom_call.1
$region0: #{tpu_custom_call.1}
  #allocation0 [shape = 'u32[]', space=smem, size = 0x4, offset = 0x4, fixed_abs, tag = 'smem constant byte address 0x4 - core index']
  #allocation1 [shape = 'u32[144,128]{1,0:T(1,128)}', space=vmem, size = 0x12000, scoped, tag = 'internal scratch']
  #allocation2 [shape = 'f32[1]{0:T(128)S(6)}', space=smem, size = 0x200, scoped, tag = 'scoped memory for tpu_custom_call.1']
  %s0 = inlined_call_operand.<no memory space> [shape: f32[1], index: 0, kind: input, shape index: {}]
  %s1 = inlined_call_operand.hbm [shape: f32[8,256], index: 1, kind: input, shape index: {}]
  %s2 = inlined_call_operand.hbm [shape: f32[8,256], index: 2, kind: output, shape index: {}]
  %s3 = sld [smem:[#allocation0]]
  $region22: #{tpu_custom_call.1} parent=0
    _
  %s5 = ssub.s32 1, %s3
  %s6 = scalar_select 0, %s5, %s3
  %7 = sst [smem:[#allocation2]] %s0
  $region1: #{tpu_custom_call.1} parent=0
    #allocation3 [shape = 'u8[8192]{0}', space=vmem, size = 0x2000, scoped, tag = 'input window, operand 1, single buffered']
    #allocation4 [shape = 's32[1]{0}', space=sflag, size = 0x4, scoped, tag = 'scoped memory for tpu_custom_call.1']
    #allocation5 [shape = 's32[1]{0}', space=sflag, size = 0x4, scoped, tag = 'scoped memory for tpu_custom_call.1']
    #allocation6 [shape = 'u8[8192]{0}', space=vmem, size = 0x2000, scoped, tag = 'output window, operand 0, single buffered']
    %8 = vsyncpa [#allocation4], 0
    %9 = vsyncpa [#allocation5], 0
    // Predicated region
    $region2: #{tpu_custom_call.1} parent=1 // pred_check
      _
    $region3: #{tpu_custom_call.1} parent=1 // pred_check_branch
      %11 = sbr.rel (0) target = $region5
    $region4: #{tpu_custom_call.1} parent=1 // pred_region
      _
    $region5: #{tpu_custom_call.1} parent=1 // pred_fallthru
      _
    // Predicated region
    $region6: #{tpu_custom_call.1} parent=1 // pred_check
      _
    $region7: #{tpu_custom_call.1} parent=1 // pred_check_branch
      %13 = sbr.rel (0) target = $region9
    $region8: #{tpu_custom_call.1} parent=1 // pred_region
      %s15 = ssub.s32 256, 256
      %16 = vsyncadd [#allocation4], %s15
      %s18 = sshll.u32 [#allocation3], 4
      %s19 = int_to_ptr.vmem [resolvable:$true] %s18
      %21 = dma.hbm_to_vmem [thread:$0]  %s1, 256, %s19, [#allocation4]
    $region9: #{tpu_custom_call.1} parent=1 // pred_fallthru
      _
    // Predicated region
    $region10: #{tpu_custom_call.1} parent=1 // pred_check
      _
    $region11: #{tpu_custom_call.1} parent=1 // pred_check_branch
      %23 = sbr.rel (0) target = $region13
    $region12: #{tpu_custom_call.1} parent=1 // pred_region
      %24 = dma.done [#allocation4], 256
    $region13: #{tpu_custom_call.1} parent=1 // pred_fallthru
      _
    %s25 = sld [smem:[#allocation2]]
    %v26 = vld [vmem:[#allocation3] sm:$0xff]
    %v27 = vld [vmem:[#allocation3 + $0x8] sm:$0xff]
    %v28 = vstv %s25
    %v29 = vmax.f32 %v26, %v28
    %v30 = vmax.f32 %v27, %v28
    %31 = vst [vmem:[#allocation6] sm:$0xff] %v29
    %32 = vst [vmem:[#allocation6 + $0x8] sm:$0xff] %v30
    // Predicated region
    $region14: #{tpu_custom_call.1} parent=1 // pred_check
      _
    $region15: #{tpu_custom_call.1} parent=1 // pred_check_branch
      %34 = sbr.rel (0) target = $region17
    $region16: #{tpu_custom_call.1} parent=1 // pred_region
      %s36 = ssub.s32 256, 256
      %37 = vsyncadd [#allocation5], %s36
      %s39 = sshll.u32 [#allocation6], 4
      %s40 = int_to_ptr.vmem [resolvable:$true] %s39
      %42 = dma.vmem_to_hbm [thread:$0]  %s40, 256, %s2, [#allocation5]
    $region17: #{tpu_custom_call.1} parent=1 // pred_fallthru
      _
    // Predicated region
    $region18: #{tpu_custom_call.1} parent=1 // pred_check
      _
    $region19: #{tpu_custom_call.1} parent=1 // pred_check_branch
      %44 = sbr.rel (0) target = $region21
    $region20: #{tpu_custom_call.1} parent=1 // pred_region
      %45 = dma.done [#allocation5], 256
    $region21: #{tpu_custom_call.1} parent=1 // pred_fallthru
      _
    %46 = vsyncpa [#allocation4], 1
    %47 = vsyncpa [#allocation5], 1

</llo_original>
